<compile_context>
chip_gen: v5e
topology: v5e:2x2
jax: 0.10.0
libtpu: 0.0.40
codegen_flags: <defaults>
</compile_context>

<pallas_src>
import functools

import jax
import jax.numpy as jnp
from jax.experimental import pallas as pl
from jax.experimental.pallas import tpu as pltpu

SUPER_PARAM_1 = 5.0
SUPER_PARAM_2 = 3.0
_SCALE1_SQ = SUPER_PARAM_1 * SUPER_PARAM_1  # 25.0
_SCALE2_SQ = SUPER_PARAM_2 * SUPER_PARAM_2  # 9.0

# Tiling knobs.
_TILE_BYTES_CAP = 3 * 1024 * 1024       # per-input tile (x2 inputs x2 buffers ~= 12 MiB)
_ROW_GROUP_BYTES_MAX = 6 * 1024 * 1024  # a single 8-row group wider than this -> XLA fallback
_MAX_TILE_ROWS = 1024
_FAST_PATH_ELEMS = 4096
_VMEM_LIMIT_BYTES = 32 * 1024 * 1024    # within default/physical limits on v5e/v6e/v7x


def _buff_loss_kernel(norms_ref, labels_ref, out_ref, *,
                      n_groups, group_rows, tile_rows, b_true, need_mask):
    """One grid step: partial sums of scaled squared diffs for one row tile.

    Writes a private (group_rows, S) float32 block; the wrapper sums them and
    divides by the true element count.
    """
    tile_row0 = pl.program_id(0) * tile_rows
    s = out_ref.shape[1]

    def one_group(r):
        # r: row offset inside this tile (Python int on the static path,
        # traced multiple of group_rows on the fori_loop path).
        n = norms_ref[pl.ds(r, group_rows), :].astype(jnp.float32)
        l = labels_ref[pl.ds(r, group_rows), :].astype(jnp.float32)
        scale_sq = jnp.where(l == 1.0, jnp.float32(_SCALE1_SQ),
                             jnp.where(l == 2.0, jnp.float32(_SCALE2_SQ),
                                       jnp.float32(1.0)))
        diff = n - l
        d2 = diff * diff * scale_sq
        if need_mask:
            # Tail tile may read undefined rows past the true batch size;
            # zero their contribution.  (group_rows, 1) iota broadcasts across
            # lanes; jnp.where selects, so garbage (even NaN) never propagates.
            row_ids = (tile_row0 + r
                       + jax.lax.broadcasted_iota(jnp.int32, (group_rows, 1), 0))
            d2 = jnp.where(row_ids < b_true, d2, jnp.float32(0.0))
        return d2

    if n_groups <= 8:
        # Short trip count: fully static unroll, static slices (zero cost).
        acc = one_group(0)
        for g in range(1, n_groups):
            acc = acc + one_group(g * group_rows)
        out_ref[...] = acc
    else:
        def body(g, acc):
            r = pl.multiple_of(g * group_rows, group_rows)
            return acc + one_group(r)

        out_ref[...] = jax.lax.fori_loop(
            0, n_groups, body,
            jnp.zeros((group_rows, s), jnp.float32),
            unroll=8)


def _folded_loss_jnp(norms, pseu_labels):
    n = norms.astype(jnp.float32)
    l = pseu_labels.astype(jnp.float32)
    scale_sq = jnp.where(l == 1.0, _SCALE1_SQ,
                         jnp.where(l == 2.0, _SCALE2_SQ, 1.0))
    d = n - l
    return jnp.mean(d * d * scale_sq)


def _round_down(x, m):
    return (x // m) * m


@functools.partial(jax.jit, static_argnames=("force_pallas",))
def buff_loss(norms, pseu_labels, *, force_pallas=False):
    """norms: (B, S), pseu_labels: (B, S) -> scalar float32 MSE loss."""
    assert norms.ndim == 2 and norms.shape == pseu_labels.shape
    B, S = norms.shape
    n_total = B * S

    # Tiny inputs: pallas_call fixed overhead (grid setup, DMA prime) dominates.
    if not force_pallas and n_total < _FAST_PATH_ELEMS:
        return _folded_loss_jnp(norms, pseu_labels)

    in_itemsize = (jnp.dtype(norms.dtype).itemsize
                   + jnp.dtype(pseu_labels.dtype).itemsize)
    row_bytes = S * max(jnp.dtype(norms.dtype).itemsize,
                        jnp.dtype(pseu_labels.dtype).itemsize)

    if 8 * row_bytes > _ROW_GROUP_BYTES_MAX:
        # TODO(synk): column-tile extremely wide rows instead of falling back.
        return _folded_loss_jnp(norms, pseu_labels)

    if B < 8:
        # Row block equal to the full (tiny) batch dim: single tile, no mask.
        tile_rows = B
        group_rows = B
    else:
        cap_rows = max(8, _round_down(_TILE_BYTES_CAP // max(row_bytes, 1), 8))
        tile_rows = max(8, min(_round_down(B, 8), cap_rows, _MAX_TILE_ROWS))
        group_rows = 8

    n_groups = tile_rows // group_rows
    n_tiles = pl.cdiv(B, tile_rows)
    need_mask = (n_tiles * tile_rows != B)
    out_rows = n_tiles * group_rows

    kernel = functools.partial(
        _buff_loss_kernel,
        n_groups=n_groups, group_rows=group_rows, tile_rows=tile_rows,
        b_true=B, need_mask=need_mask)

    cost = pl.CostEstimate(
        flops=8 * n_total,
        transcendentals=0,
        bytes_accessed=n_total * in_itemsize + out_rows * S * 4)

    partial_sums = pl.pallas_call(
        kernel,
        out_shape=jax.ShapeDtypeStruct((out_rows, S), jnp.float32),
        grid=(n_tiles,),
        in_specs=[
            pl.BlockSpec((tile_rows, S), lambda i: (i, 0)),
            pl.BlockSpec((tile_rows, S), lambda i: (i, 0)),
        ],
        out_specs=pl.BlockSpec((group_rows, S), lambda i: (i, 0)),
        compiler_params=pltpu.CompilerParams(
            dimension_semantics=("parallel",),
            vmem_limit_bytes=_VMEM_LIMIT_BYTES),
        cost_estimate=cost,
    )(norms, pseu_labels)

    # Single cross-lane reduction + division by the TRUE element count.
    return jnp.sum(partial_sums) / jnp.float32(n_total)


def _reference(norms, pseu_labels):
    n = norms.astype(jnp.float32)
    l = pseu_labels.astype(jnp.float32)
    scale = jnp.where(l == 1.0, SUPER_PARAM_1,
                      jnp.where(l == 2.0, SUPER_PARAM_2, 1.0))
    return jnp.mean((n * scale - l * scale) ** 2)


if __name__ == "__main__":
    key = jax.random.PRNGKey(0)
    k1, k2, k3, k4, k5, k6 = jax.random.split(key, 6)

    # 1) Small shape consistent with the module: (batch, seq) = (2, 8),
    #    forced through the Pallas path (full-dim row block, single tile).
    batch, seq = 2, 8
    norms = jax.random.normal(k1, (batch, seq), dtype=jnp.float32)
    labels = jax.random.randint(k2, (batch, seq), 0, 3).astype(jnp.float32)
    loss = buff_loss(norms, labels, force_pallas=True)
    jax.block_until_ready(loss)
    ref = _reference(norms, labels)
    assert jnp.allclose(loss, ref, rtol=1e-5, atol=1e-7), (loss, ref)

    # 2) Same tiny shape through the default (fast) path.
    loss_fast = buff_loss(norms, labels)
    jax.block_until_ready(loss_fast)
    assert jnp.allclose(loss_fast, ref, rtol=1e-5, atol=1e-7), (loss_fast, ref)

    # 3) Ragged shape: multi-tile grid + tail-row masking, no padding copies.
    B2, S2 = 20, 300
    norms2 = jax.random.normal(k3, (B2, S2), dtype=jnp.float32)
    labels2 = jax.random.randint(k4, (B2, S2), 0, 3).astype(jnp.float32)
    loss2 = buff_loss(norms2, labels2)
    jax.block_until_ready(loss2)
    ref2 = _reference(norms2, labels2)
    assert jnp.allclose(loss2, ref2, rtol=1e-5, atol=1e-7), (loss2, ref2)

    # 4) bf16 inputs: upcast happens inside the kernel tile (half HBM traffic).
    B3, S3 = 64, 384
    norms3 = jax.random.normal(k5, (B3, S3), dtype=jnp.bfloat16)
    labels3 = jax.random.randint(k6, (B3, S3), 0, 3).astype(jnp.bfloat16)
    loss3 = buff_loss(norms3, labels3)
    jax.block_until_ready(loss3)
    ref3 = _reference(norms3, labels3)
    assert jnp.allclose(loss3, ref3, rtol=1e-4, atol=1e-6), (loss3, ref3)

    print("KERNEL_OK")
</pallas_src>

<mosaic_0001>
module attributes {stable_mosaic.version = 11 : i64} {
  func.func @_buff_loss_kernel(%arg0: i32, %arg1: memref<2x8xf32, #tpu.memory_space<vmem>>, %arg2: memref<2x8xf32, #tpu.memory_space<vmem>>, %arg3: memref<2x8xf32, #tpu.memory_space<vmem>>) attributes {dimension_semantics = [#tpu.dimension_semantics<parallel>], iteration_bounds = array<i64: 1>, scalar_prefetch = 0 : i64, scratch_operands = 0 : i64, tpu.core_type = #tpu.core_type<tc>, window_params = [{transform_indices = @transform_0, window_bounds = array<i64: 2, 8>}, {transform_indices = @transform_1, window_bounds = array<i64: 2, 8>}, {transform_indices = @transform_2, window_bounds = array<i64: 2, 8>}]} {
    %c0 = arith.constant 0 : index
    %c0_0 = arith.constant 0 : index
    %0 = vector.load %arg1[%c0, %c0_0] : memref<2x8xf32, #tpu.memory_space<vmem>>, vector<2x8xf32>
    %c0_1 = arith.constant 0 : index
    %c0_2 = arith.constant 0 : index
    %1 = vector.load %arg2[%c0_1, %c0_2] : memref<2x8xf32, #tpu.memory_space<vmem>>, vector<2x8xf32>
    %cst = arith.constant 1.000000e+00 : f32
    %2 = vector.broadcast %cst : f32 to vector<2x8xf32>
    %3 = arith.cmpf oeq, %1, %2 : vector<2x8xf32>
    %cst_3 = arith.constant 2.000000e+00 : f32
    %4 = vector.broadcast %cst_3 : f32 to vector<2x8xf32>
    %5 = arith.cmpf oeq, %1, %4 : vector<2x8xf32>
    %cst_4 = arith.constant 9.000000e+00 : f32
    %cst_5 = arith.constant 1.000000e+00 : f32
    %6 = vector.broadcast %cst_4 : f32 to vector<2x8xf32>
    %7 = vector.broadcast %cst_5 : f32 to vector<2x8xf32>
    %8 = arith.select %5, %6, %7 : vector<2x8xi1>, vector<2x8xf32>
    %cst_6 = arith.constant 2.500000e+01 : f32
    %9 = vector.broadcast %cst_6 : f32 to vector<2x8xf32>
    %10 = arith.select %3, %9, %8 : vector<2x8xi1>, vector<2x8xf32>
    %11 = arith.subf %0, %1 : vector<2x8xf32>
    %12 = arith.mulf %11, %11 : vector<2x8xf32>
    %13 = arith.mulf %12, %10 : vector<2x8xf32>
    %c0_7 = arith.constant 0 : index
    %c0_8 = arith.constant 0 : index
    %14 = vector.load %arg3[%c0_7, %c0_8] : memref<2x8xf32, #tpu.memory_space<vmem>>, vector<2x8xf32>
    tpu.vector_store %arg3[%c0_7, %c0_8], %13 {strides = array<i32>} : memref<2x8xf32, #tpu.memory_space<vmem>>, vector<2x8xf32>,
    return
  }
  func.func @transform_0(%arg0: i32) -> (i32, i32) {
    %c0_i32 = arith.constant 0 : i32
    %c0_i32_0 = arith.constant 0 : i32
    return %arg0, %c0_i32 : i32, i32
  }
  func.func @transform_1(%arg0: i32) -> (i32, i32) {
    %c0_i32 = arith.constant 0 : i32
    %c0_i32_0 = arith.constant 0 : i32
    return %arg0, %c0_i32 : i32, i32
  }
  func.func @transform_2(%arg0: i32) -> (i32, i32) {
    %c0_i32 = arith.constant 0 : i32
    %c0_i32_0 = arith.constant 0 : i32
    return %arg0, %c0_i32 : i32, i32
  }
}

</mosaic_0001>

<llo_original>
// kernel: buff_loss.1
$region0: #{buff_loss.1}
  #allocation0 [shape = 'u32[]', space=smem, size = 0x4, offset = 0x4, fixed_abs, tag = 'smem constant byte address 0x4 - core index']
  #allocation1 [shape = 'u32[72,128]{1,0:T(1,128)}', space=vmem, size = 0x9000, scoped, tag = 'internal scratch']
  %s0 = inlined_call_operand.hbm [shape: f32[2,8], index: 0, kind: input, shape index: {}]
  %s1 = inlined_call_operand.hbm [shape: f32[2,8], index: 1, kind: input, shape index: {}]
  %s2 = inlined_call_operand.vmem [shape: f32[2,8], index: 2, kind: output, shape index: {}]
  %s3 = sld [smem:[#allocation0]]
  $region26: #{buff_loss.1} parent=0
    _
  %s5 = ssub.s32 1, %s3
  %s6 = scalar_select 0, %s5, %s3
  $region1: #{buff_loss.1} parent=0
    #allocation2 [shape = 'u8[1024]{0}', space=vmem, size = 0x400, scoped, tag = 'input window, operand 0, single buffered']
    #allocation3 [shape = 's32[1]{0}', space=sflag, size = 0x4, scoped, tag = 'scoped memory for buff_loss.1']
    #allocation4 [shape = 'u8[1024]{0}', space=vmem, size = 0x400, scoped, tag = 'input window, operand 1, single buffered']
    #allocation5 [shape = 's32[1]{0}', space=sflag, size = 0x4, scoped, tag = 'scoped memory for buff_loss.1']
    %7 = vsyncpa [#allocation3], 0
    %8 = vsyncpa [#allocation5], 0
    // Predicated region
    $region2: #{buff_loss.1} parent=1 // pred_check
      _
    $region3: #{buff_loss.1} parent=1 // pred_check_branch
      %10 = sbr.rel (0) target = $region5
    $region4: #{buff_loss.1} parent=1 // pred_region
      %12 = vsyncadd [#allocation3], 0
      %s14 = sshll.u32 %s0, 4
      %s15 = int_to_ptr.hbm [resolvable:$true] %s14
      %s16 = sshll.u32 [#allocation2], 4
      %s17 = int_to_ptr.vmem [resolvable:$true] %s16
      %19 = dma.hbm_to_vmem [thread:$0]  %s15, 32, %s17, [#allocation3]
    $region5: #{buff_loss.1} parent=1 // pred_fallthru
      _
    // Predicated region
    $region6: #{buff_loss.1} parent=1 // pred_check
      _
    $region7: #{buff_loss.1} parent=1 // pred_check_branch
      %21 = sbr.rel (0) target = $region9
    $region8: #{buff_loss.1} parent=1 // pred_region
      %23 = vsyncadd [#allocation5], 0
      %s25 = sshll.u32 %s1, 4
      %s26 = int_to_ptr.hbm [resolvable:$true] %s25
      %s27 = sshll.u32 [#allocation4], 4
      %s28 = int_to_ptr.vmem [resolvable:$true] %s27
      %30 = dma.hbm_to_vmem [thread:$0]  %s26, 32, %s28, [#allocation5]
    $region9: #{buff_loss.1} parent=1 // pred_fallthru
      _
    // Predicated region
    $region10: #{buff_loss.1} parent=1 // pred_check
      _
    $region11: #{buff_loss.1} parent=1 // pred_check_branch
      %32 = sbr.rel (0) target = $region13
    $region12: #{buff_loss.1} parent=1 // pred_region
      %34 = dma.done [#allocation3], 32
    $region13: #{buff_loss.1} parent=1 // pred_fallthru
      _
    // Predicated region
    $region14: #{buff_loss.1} parent=1 // pred_check
      _
    $region15: #{buff_loss.1} parent=1 // pred_check_branch
      %36 = sbr.rel (0) target = $region17
    $region16: #{buff_loss.1} parent=1 // pred_region
      %38 = dma.done [#allocation5], 32
    $region17: #{buff_loss.1} parent=1 // pred_fallthru
      _
    %v39 = vld [vmem:[#allocation2] sm:$0x3]
    %v40 = vld [vmem:[#allocation4] sm:$0x3]
    %vm41 = vcmp.eq.f32.partialorder %v40, 1.0
    %vm42 = vcmp.eq.f32.partialorder %v40, 2.0
    %v43 = vsel %vm42, 9.0, 1.0
    %v44 = vsel %vm41, 25.0, %v43
    %v45 = vsub.f32 %v39, %v40
    %v46 = vmul.f32 %v45, %v45
    %v47 = vmul.f32 %v46, %v44
    %vm48 = vcmask 58368
    %49 = vst.msk [vmem:[%s2] sm:$0x3] %vm48, %v47
    // Predicated region
    $region18: #{buff_loss.1} parent=1 // pred_check
      _
    $region19: #{buff_loss.1} parent=1 // pred_check_branch
      %51 = sbr.rel (0) target = $region21
    $region20: #{buff_loss.1} parent=1 // pred_region
      _
    $region21: #{buff_loss.1} parent=1 // pred_fallthru
      _
    // Predicated region
    $region22: #{buff_loss.1} parent=1 // pred_check
      _
    $region23: #{buff_loss.1} parent=1 // pred_check_branch
      %53 = sbr.rel (0) target = $region25
    $region24: #{buff_loss.1} parent=1 // pred_region
      _
    $region25: #{buff_loss.1} parent=1 // pred_fallthru
      _
    %54 = vsyncpa [#allocation3], 1
    %55 = vsyncpa [#allocation5], 1

</llo_original>
